<compile_context>
chip_gen: v7x
topology: tpu7x:2x2x1
jax: 0.10.0
libtpu: 0.0.40
codegen_flags: <defaults>
</compile_context>

<pallas_src>
import functools

import jax
import jax.numpy as jnp
from jax.experimental import pallas as pl
from jax.experimental.pallas import tpu as pltpu


# Packed side-array row layout ([8, R] f32, one DMA stream per grid step).
_S_TGT, _S_PX, _S_PY, _S_TX, _S_TY, _S_CPV, _S_WT = 0, 1, 2, 3, 4, 5, 6


# ----------------------------------------------------------------------------
# Kernels (lane-dense: classes on sublanes, queries on lanes)
# ----------------------------------------------------------------------------
def _scalar_lanes(out_ref, vals):
    """Accumulate scalars into lanes 0..len(vals)-1 of row 0 of the (8,8) block."""
    row = jax.lax.broadcasted_iota(jnp.int32, out_ref.shape, 0)
    lane = jax.lax.broadcasted_iota(jnp.int32, out_ref.shape, 1)
    first = row == 0
    contrib = jnp.zeros(out_ref.shape, jnp.float32)
    for k, v in enumerate(vals):
        contrib = contrib + jnp.where(jnp.logical_and(first, lane == k), v, 0.0)
    out_ref[...] += contrib


def _ce_cp_kernel(logits_ref, side_ref, out_ref, *,
                  total_rows, block_cols, blocks_per_core):
    """Weighted cross-entropy (num, den) + masked L1 center-point partial sums."""
    c = pl.program_id(0)          # core split (parallel)
    i = pl.program_id(1)          # column-block index within this core (arbitrary)

    @pl.when(i == 0)
    def _():
        out_ref[...] = jnp.zeros_like(out_ref)

    g = c * blocks_per_core + i                     # global column block (may run past end)
    col0 = g * block_cols

    x = logits_ref[...].astype(jnp.float32)         # [K, TR] (upcast in-kernel)
    side = side_ref[...]                            # [8, TR] f32

    lane = jax.lax.broadcasted_iota(jnp.int32, (1, x.shape[1]), 1)
    valid = (col0 + lane) < total_rows              # [1, TR] column validity (ragged tail)

    side = jnp.where(valid, side, 0.0)              # zero tail garbage once
    x = jnp.where(valid, x, 0.0)                    # keeps exp/lse finite on tail columns

    tgt = side[_S_TGT:_S_TGT + 1, :].astype(jnp.int32)   # [1, TR]
    pcp = side[_S_PX:_S_PY + 1, :]                        # [2, TR]
    tcp = side[_S_TX:_S_TY + 1, :]                        # [2, TR]
    cpv = side[_S_CPV:_S_CPV + 1, :]                      # [1, TR]
    wt = side[_S_WT:_S_WT + 1, :]                         # weight[target]; 0 on tail

    cls = jax.lax.broadcasted_iota(jnp.int32, x.shape, 0)
    onehot = jnp.where(jnp.logical_and(cls == tgt, valid), 1.0, 0.0)   # [K, TR]

    m = jnp.max(x, axis=0, keepdims=True)
    lse = m + jnp.log(jnp.sum(jnp.exp(x - m), axis=0, keepdims=True))
    x_t = jnp.sum(onehot * x, axis=0, keepdims=True)      # logit at target class
    nll = lse - x_t                                        # [1, TR]

    num = jnp.sum(wt * nll)
    den = jnp.sum(wt)
    l1 = jnp.sum(jnp.abs(pcp - tcp) * cpv)                 # fused L1 center-point partial

    _scalar_lanes(out_ref, (num, den, l1))


def _focal_cp_kernel(logits_ref, side_ref, out_ref, *,
                     alpha, gamma, total_rows, block_cols, blocks_per_core):
    """Sigmoid focal loss sum + masked L1 center-point partial sums."""
    c = pl.program_id(0)
    i = pl.program_id(1)

    @pl.when(i == 0)
    def _():
        out_ref[...] = jnp.zeros_like(out_ref)

    g = c * blocks_per_core + i
    col0 = g * block_cols

    x = logits_ref[...].astype(jnp.float32)         # [C, TR]
    side = side_ref[...]                            # [8, TR]

    lane = jax.lax.broadcasted_iota(jnp.int32, (1, x.shape[1]), 1)
    valid = (col0 + lane) < total_rows
    validf = valid.astype(jnp.float32)

    side = jnp.where(valid, side, 0.0)
    x = jnp.where(valid, x, 0.0)

    tgt = side[_S_TGT:_S_TGT + 1, :].astype(jnp.int32)
    pcp = side[_S_PX:_S_PY + 1, :]
    tcp = side[_S_TX:_S_TY + 1, :]
    cpv = side[_S_CPV:_S_CPV + 1, :]

    cls = jax.lax.broadcasted_iota(jnp.int32, x.shape, 0)
    t = jnp.where(jnp.logical_and(cls == tgt, valid), 1.0, 0.0)   # one-hot targets

    # Shared exp(-|x|) feeds both sigmoid and softplus; EUP approx reciprocal +
    # one Newton step keeps parity with the exact sigmoid.
    e = jnp.exp(-jnp.abs(x))
    d = 1.0 + e
    inv = pl.reciprocal(d, approx=True)
    inv = inv * (2.0 - d * inv)
    p = jnp.where(x >= 0.0, inv, e * inv)                          # sigmoid(x)
    ce = jnp.maximum(x, 0.0) + jnp.log(1.0 + e) - x * t            # BCE-with-logits

    p_t = p * t + (1.0 - p) * (1.0 - t)
    om = 1.0 - p_t
    if gamma == 2.0:                   # avoid pow -> exp(log) on the EUP
        mod = om * om
    elif gamma == 1.0:
        mod = om
    elif gamma == 0.0:
        mod = jnp.ones_like(om)
    else:
        mod = jnp.power(om, gamma)
    loss = ce * mod
    if alpha >= 0:
        loss = (alpha * t + (1.0 - alpha) * (1.0 - t)) * loss

    fsum = jnp.sum(loss * validf)
    l1 = jnp.sum(jnp.abs(pcp - tcp) * cpv)

    _scalar_lanes(out_ref, (fsum, l1))


# ----------------------------------------------------------------------------
# pallas_call wrappers
# ----------------------------------------------------------------------------
def _plan_cols(R, K, row_block):
    """Pick the lane-axis tile so ~14 live [K, tile] f32 temporaries stay in VMEM."""
    live_bytes_per_col = 14 * max(K, 8) * 4
    cap = max(128, ((24 << 20) // live_bytes_per_col) // 128 * 128)
    rb = min(row_block, cap)
    tr = R if R <= rb else rb            # tile lane dim: full R, or multiple of 128
    n_blocks = pl.cdiv(R, tr)
    return tr, n_blocks


def _pack_side(target_classes, pred_cp, tgt_cp, cp_valid, wt_row):
    """Pack the five narrow per-query tensors into one [8, R] f32 array."""
    R = target_classes.size
    rows = [
        target_classes.reshape(R).astype(jnp.float32),
        pred_cp.reshape(R, 2)[:, 0].astype(jnp.float32),
        pred_cp.reshape(R, 2)[:, 1].astype(jnp.float32),
        tgt_cp.reshape(R, 2)[:, 0].astype(jnp.float32),
        tgt_cp.reshape(R, 2)[:, 1].astype(jnp.float32),
        cp_valid.reshape(R).astype(jnp.float32),
        wt_row.reshape(R).astype(jnp.float32),
        jnp.zeros((R,), jnp.float32),
    ]
    return jnp.stack(rows, axis=0)       # [8, R]


def _launch(kernel, logits_kr, side, R, K, tr, n_blocks):
    bpc = pl.cdiv(n_blocks, 2)           # column blocks handled per core

    def blk_map(c, i):
        # Clamp out-of-range blocks (odd block counts / idle second core on v5e/v6e);
        # they are fully masked in-kernel via the column-validity mask.
        return (0, jnp.minimum(c * bpc + i, n_blocks - 1))

    kern = functools.partial(kernel, total_rows=R, block_cols=tr, blocks_per_core=bpc)
    out = pl.pallas_call(
        kern,
        out_shape=jax.ShapeDtypeStruct((16, 8), jnp.float32),   # 2 cores x (8,8) block
        grid=(2, bpc),
        in_specs=[
            pl.BlockSpec((K, tr), blk_map),      # logits [K, R]: lane-dense queries
            pl.BlockSpec((8, tr), blk_map),      # packed side stream [8, R]
        ],
        out_specs=pl.BlockSpec((8, 8), lambda c, i: (c, 0)),     # per-core accumulator
        compiler_params=pltpu.CompilerParams(
            dimension_semantics=("parallel", "arbitrary")),
    )(logits_kr, side)
    return out.sum(axis=0)               # collapse per-core / padding rows -> [8]


def weighted_ce_and_l1(logits, target_classes, pred_cp, tgt_cp, cp_valid,
                       class_weight, *, row_block=2048):
    B, Q, K = logits.shape
    R = B * Q
    tr, n_blocks = _plan_cols(R, K, row_block)
    logits_kr = logits.reshape(R, K).T                    # [K, R]; keeps native dtype (bf16 ok)
    wt_row = class_weight.astype(jnp.float32)[target_classes.reshape(R)]
    side = _pack_side(target_classes, pred_cp, tgt_cp, cp_valid, wt_row)
    tot = _launch(_ce_cp_kernel, logits_kr, side, R, K, tr, n_blocks)
    return tot[0], tot[1], tot[2]                         # num, den, l1


def focal_and_l1(logits, target_classes, pred_cp, tgt_cp, cp_valid,
                 *, alpha, gamma, row_block=2048):
    B, Q, C = logits.shape
    R = B * Q
    tr, n_blocks = _plan_cols(R, C, row_block)
    logits_kr = logits.reshape(R, C).T                    # [C, R]
    side = _pack_side(target_classes, pred_cp, tgt_cp, cp_valid,
                      jnp.zeros((R,), jnp.float32))
    kern = functools.partial(_focal_cp_kernel, alpha=float(alpha), gamma=float(gamma))
    tot = _launch(kern, logits_kr, side, R, C, tr, n_blocks)
    return tot[0], tot[1]                                 # fsum, l1


# ----------------------------------------------------------------------------
# SetCriterion equivalent
# ----------------------------------------------------------------------------
class SetCriterionPallas:
    def __init__(self, num_classes, matcher, focal_alpha, focal_gamma,
                 weight_dict, focal_loss):
        self.num_classes = num_classes
        self.matcher = matcher
        self.focal_alpha = focal_alpha
        self.focal_gamma = focal_gamma
        self.weight_dict = weight_dict
        self.focal_loss = focal_loss
        # buffer: empty_weight = ones(num_classes+1), last entry 0.1
        self.empty_weight = jnp.ones(num_classes + 1, jnp.float32).at[-1].set(0.1)

    @staticmethod
    def _get_src_permutation_idx(indices):
        batch_idx = jnp.concatenate(
            [jnp.full_like(src, i) for i, (src, _) in enumerate(indices)])
        src_idx = jnp.concatenate([src for src, _ in indices])
        return batch_idx, src_idx

    def forward(self, outputs, targets, log=True):
        indices = self.matcher(outputs, targets)

        src_logits = outputs['pred_logits']             # [B, Q, K]
        pred_cp = outputs['pred_center_points']         # [B, Q, 2]
        B, Q, K = src_logits.shape

        # num_objects, clamped >= 1 to avoid divide-by-zero on empty batches
        num_objects = jnp.maximum(
            jnp.asarray(float(sum(len(t['labels']) for t in targets)), jnp.float32), 1.0)

        batch_idx, src_idx = self._get_src_permutation_idx(indices)
        target_classes_o = jnp.concatenate(
            [t['labels'][J] for t, (_, J) in zip(targets, indices)])
        target_cps_o = jnp.concatenate(
            [t['center_points'][J] for t, (_, J) in zip(targets, indices)], axis=0)

        # Dense per-query targets (int classes only; one-hot is built in-kernel).
        target_classes = jnp.full((B, Q), self.num_classes, jnp.int32)
        target_classes = target_classes.at[batch_idx, src_idx].set(
            target_classes_o.astype(jnp.int32))

        # Scatter matched target center points + validity mask (fused L1).
        tgt_cp_full = jnp.zeros((B, Q, 2), pred_cp.dtype)
        tgt_cp_full = tgt_cp_full.at[batch_idx, src_idx].set(
            target_cps_o.astype(pred_cp.dtype))
        cp_valid = jnp.zeros((B, Q), jnp.float32).at[batch_idx, src_idx].set(1.0)

        if self.focal_loss:
            fsum, l1 = focal_and_l1(
                src_logits, target_classes, pred_cp, tgt_cp_full, cp_valid,
                alpha=self.focal_alpha, gamma=self.focal_gamma)
            # sigmoid_focal_loss: loss.mean(1).sum()/num_objects then *Q == total/num_objects
            loss_ce = fsum / num_objects
        else:
            num, den, l1 = weighted_ce_and_l1(
                src_logits, target_classes, pred_cp, tgt_cp_full, cp_valid,
                self.empty_weight)
            loss_ce = num / jnp.maximum(den, 1e-12)      # weighted-mean CE

        losses = {'loss_ce': loss_ce,
                  'loss_center_point': l1 / num_objects}

        if log:
            # logging-only metric, kept in plain JAX
            matched = src_logits[batch_idx, src_idx]
            acc = 100.0 * jnp.mean(
                (jnp.argmax(matched, axis=-1) == target_classes_o).astype(jnp.float32))
            losses['class_error'] = 100.0 - acc
        return losses


# ----------------------------------------------------------------------------
# Deterministic stand-in matcher
# ----------------------------------------------------------------------------
def identity_matcher(outputs, targets):
    return [(jnp.arange(len(t['labels']), dtype=jnp.int32),
             jnp.arange(len(t['labels']), dtype=jnp.int32)) for t in targets]


# ----------------------------------------------------------------------------
# main
# ----------------------------------------------------------------------------
if __name__ == "__main__":
    key = jax.random.PRNGKey(0)
    B, Q, num_classes = 2, 8, 4
    n_objs = [3, 2]  # number of target objects per image

    k1, k2, k3, k4, k5 = jax.random.split(key, 5)
    logits_focal = jax.random.normal(k1, (B, Q, num_classes), jnp.float32)
    logits_ce = jax.random.normal(k2, (B, Q, num_classes + 1), jnp.float32)
    center_points = jax.random.uniform(k3, (B, Q, 2), jnp.float32)

    targets = []
    lkeys = jax.random.split(k4, B)
    ckeys = jax.random.split(k5, B)
    for b in range(B):
        targets.append({
            'labels': jax.random.randint(lkeys[b], (n_objs[b],), 0, num_classes,
                                         dtype=jnp.int32),
            'center_points': jax.random.uniform(ckeys[b], (n_objs[b], 2), jnp.float32),
        })

    weight_dict = {'loss_ce': 1.0, 'loss_center_point': 5.0}

    # focal-loss variant
    crit_focal = SetCriterionPallas(num_classes, identity_matcher,
                                    focal_alpha=0.25, focal_gamma=2.0,
                                    weight_dict=weight_dict, focal_loss=True)
    out_focal = crit_focal.forward(
        {'pred_logits': logits_focal, 'pred_center_points': center_points}, targets)

    # weighted cross-entropy variant
    crit_ce = SetCriterionPallas(num_classes, identity_matcher,
                                 focal_alpha=0.25, focal_gamma=2.0,
                                 weight_dict=weight_dict, focal_loss=False)
    out_ce = crit_ce.forward(
        {'pred_logits': logits_ce, 'pred_center_points': center_points}, targets)

    for d in (out_focal, out_ce):
        for v in d.values():
            jax.block_until_ready(v)

    print("KERNEL_OK")
</pallas_src>

<mosaic_0001>
module attributes {stable_mosaic.version = 11 : i64} {
  func.func @_focal_cp_kernel(%arg0: i32, %arg1: i32, %arg2: memref<4x16xf32, #tpu.memory_space<vmem>>, %arg3: memref<8x16xf32, #tpu.memory_space<vmem>>, %arg4: memref<8x8xf32, #tpu.memory_space<vmem>>) attributes {dimension_semantics = [#tpu.dimension_semantics<parallel>, #tpu.dimension_semantics<arbitrary>], iteration_bounds = array<i64: 2, 1>, scalar_prefetch = 0 : i64, scratch_operands = 0 : i64, tpu.core_type = #tpu.core_type<tc>, window_params = [{transform_indices = @transform_0, window_bounds = array<i64: 4, 16>}, {transform_indices = @transform_1, window_bounds = array<i64: 8, 16>}, {transform_indices = @transform_2, window_bounds = array<i64: 8, 8>}]} {
    %c0_i32 = arith.constant 0 : i32
    %0 = arith.cmpi eq, %arg1, %c0_i32 : i32
    %1 = arith.extui %0 : i1 to i32
    %c0_i32_0 = arith.constant 0 : i32
    %2 = arith.cmpi ne, %1, %c0_i32_0 : i32
    scf.if %2 {
      %cst_32 = arith.constant 0.000000e+00 : f32
      %114 = vector.broadcast %cst_32 : f32 to vector<8x8xf32>
      %c0_33 = arith.constant 0 : index
      %c0_34 = arith.constant 0 : index
      %115 = vector.load %arg4[%c0_33, %c0_34] : memref<8x8xf32, #tpu.memory_space<vmem>>, vector<8x8xf32>
      tpu.vector_store %arg4[%c0_33, %c0_34], %114 {strides = array<i32>} : memref<8x8xf32, #tpu.memory_space<vmem>>, vector<8x8xf32>,
    } else {
    }
    %c1_i32 = arith.constant 1 : i32
    %3 = arith.muli %arg0, %c1_i32 : i32
    %4 = arith.addi %3, %arg1 : i32
    %c16_i32 = arith.constant 16 : i32
    %5 = arith.muli %4, %c16_i32 : i32
    %c0 = arith.constant 0 : index
    %c0_1 = arith.constant 0 : index
    %6 = vector.load %arg2[%c0, %c0_1] : memref<4x16xf32, #tpu.memory_space<vmem>>, vector<4x16xf32>
    %c0_2 = arith.constant 0 : index
    %c0_3 = arith.constant 0 : index
    %7 = vector.load %arg3[%c0_2, %c0_3] : memref<8x16xf32, #tpu.memory_space<vmem>>, vector<8x16xf32>
    %8 = tpu.iota {dimensions = array<i32: 1>} : vector<1x16xi32>
    %9 = vector.broadcast %5 : i32 to vector<1x16xi32>
    %10 = arith.addi %9, %8 : vector<1x16xi32>
    %c16_i32_4 = arith.constant 16 : i32
    %11 = vector.broadcast %c16_i32_4 : i32 to vector<1x16xi32>
    %12 = arith.cmpi slt, %10, %11 : vector<1x16xi32>
    %13 = arith.extui %12 : vector<1x16xi1> to vector<1x16xi32>
    %14 = arith.sitofp %13 : vector<1x16xi32> to vector<1x16xf32>
    %cst = arith.constant 0.000000e+00 : f32
    %15 = vector.shape_cast %12 : vector<1x16xi1> to vector<1x16xi1>
    %16 = vector.broadcast %15 : vector<1x16xi1> to vector<8x16xi1>
    %17 = vector.broadcast %cst : f32 to vector<8x16xf32>
    %18 = arith.select %16, %7, %17 : vector<8x16xi1>, vector<8x16xf32>
    %cst_5 = arith.constant 0.000000e+00 : f32
    %19 = vector.shape_cast %12 : vector<1x16xi1> to vector<1x16xi1>
    %20 = vector.broadcast %19 : vector<1x16xi1> to vector<4x16xi1>
    %21 = vector.broadcast %cst_5 : f32 to vector<4x16xf32>
    %22 = arith.select %20, %6, %21 : vector<4x16xi1>, vector<4x16xf32>
    %23 = vector.extract_strided_slice %18 {offsets = [0, 0], sizes = [1, 16], strides = [1, 1]} : vector<8x16xf32> to vector<1x16xf32>
    %24 = arith.fptosi %23 : vector<1x16xf32> to vector<1x16xi32>
    %25 = vector.extract_strided_slice %18 {offsets = [1, 0], sizes = [2, 16], strides = [1, 1]} : vector<8x16xf32> to vector<2x16xf32>
    %26 = vector.extract_strided_slice %18 {offsets = [3, 0], sizes = [2, 16], strides = [1, 1]} : vector<8x16xf32> to vector<2x16xf32>
    %27 = vector.extract_strided_slice %18 {offsets = [5, 0], sizes = [1, 16], strides = [1, 1]} : vector<8x16xf32> to vector<1x16xf32>
    %28 = tpu.iota {dimensions = array<i32: 0>} : vector<4x16xi32>
    %29 = vector.broadcast %24 : vector<1x16xi32> to vector<4x16xi32>
    %30 = arith.cmpi eq, %28, %29 : vector<4x16xi32>
    %31 = vector.broadcast %12 : vector<1x16xi1> to vector<4x16xi1>
    %32 = arith.andi %30, %31 : vector<4x16xi1>
    %cst_6 = arith.constant 1.000000e+00 : f32
    %cst_7 = arith.constant 0.000000e+00 : f32
    %33 = vector.broadcast %cst_6 : f32 to vector<4x16xf32>
    %34 = vector.broadcast %cst_7 : f32 to vector<4x16xf32>
    %35 = arith.select %32, %33, %34 : vector<4x16xi1>, vector<4x16xf32>
    %36 = math.absf %22 : vector<4x16xf32>
    %cst_8 = arith.constant 0.000000e+00 : f32
    %37 = vector.broadcast %cst_8 : f32 to vector<4x16xf32>
    %38 = arith.subf %37, %36 : vector<4x16xf32>
    %39 = math.exp %38 : vector<4x16xf32>
    %cst_9 = arith.constant 1.000000e+00 : f32
    %40 = vector.broadcast %cst_9 : f32 to vector<4x16xf32>
    %41 = arith.addf %40, %39 : vector<4x16xf32>
    %42 = tpu.reciprocal %41 {approx = true} : vector<4x16xf32> -> vector<4x16xf32>
    %43 = arith.mulf %41, %42 : vector<4x16xf32>
    %cst_10 = arith.constant 2.000000e+00 : f32
    %44 = vector.broadcast %cst_10 : f32 to vector<4x16xf32>
    %45 = arith.subf %44, %43 : vector<4x16xf32>
    %46 = arith.mulf %42, %45 : vector<4x16xf32>
    %cst_11 = arith.constant 0.000000e+00 : f32
    %47 = vector.broadcast %cst_11 : f32 to vector<4x16xf32>
    %48 = arith.cmpf oge, %22, %47 : vector<4x16xf32>
    %49 = arith.mulf %39, %46 : vector<4x16xf32>
    %50 = arith.select %48, %46, %49 : vector<4x16xi1>, vector<4x16xf32>
    %cst_12 = arith.constant 0.000000e+00 : f32
    %51 = vector.broadcast %cst_12 : f32 to vector<4x16xf32>
    %52 = arith.maximumf %22, %51 : vector<4x16xf32>
    %cst_13 = arith.constant 1.000000e+00 : f32
    %53 = vector.broadcast %cst_13 : f32 to vector<4x16xf32>
    %54 = arith.addf %53, %39 : vector<4x16xf32>
    %55 = math.log %54 : vector<4x16xf32>
    %56 = arith.addf %52, %55 : vector<4x16xf32>
    %57 = arith.mulf %22, %35 : vector<4x16xf32>
    %58 = arith.subf %56, %57 : vector<4x16xf32>
    %59 = arith.mulf %50, %35 : vector<4x16xf32>
    %cst_14 = arith.constant 1.000000e+00 : f32
    %60 = vector.broadcast %cst_14 : f32 to vector<4x16xf32>
    %61 = arith.subf %60, %50 : vector<4x16xf32>
    %cst_15 = arith.constant 1.000000e+00 : f32
    %62 = vector.broadcast %cst_15 : f32 to vector<4x16xf32>
    %63 = arith.subf %62, %35 : vector<4x16xf32>
    %64 = arith.mulf %61, %63 : vector<4x16xf32>
    %65 = arith.addf %59, %64 : vector<4x16xf32>
    %cst_16 = arith.constant 1.000000e+00 : f32
    %66 = vector.broadcast %cst_16 : f32 to vector<4x16xf32>
    %67 = arith.subf %66, %65 : vector<4x16xf32>
    %68 = arith.mulf %67, %67 : vector<4x16xf32>
    %69 = arith.mulf %58, %68 : vector<4x16xf32>
    %cst_17 = arith.constant 2.500000e-01 : f32
    %70 = vector.broadcast %cst_17 : f32 to vector<4x16xf32>
    %71 = arith.mulf %70, %35 : vector<4x16xf32>
    %cst_18 = arith.constant 1.000000e+00 : f32
    %72 = vector.broadcast %cst_18 : f32 to vector<4x16xf32>
    %73 = arith.subf %72, %35 : vector<4x16xf32>
    %cst_19 = arith.constant 7.500000e-01 : f32
    %74 = vector.broadcast %cst_19 : f32 to vector<4x16xf32>
    %75 = arith.mulf %74, %73 : vector<4x16xf32>
    %76 = arith.addf %71, %75 : vector<4x16xf32>
    %77 = arith.mulf %76, %69 : vector<4x16xf32>
    %78 = vector.broadcast %14 : vector<1x16xf32> to vector<4x16xf32>
    %79 = arith.mulf %77, %78 : vector<4x16xf32>
    %80 = vector.shape_cast %79 : vector<4x16xf32> to vector<1x4x16xf32>
    %cst_20 = arith.constant dense<0.000000e+00> : vector<1xf32>
    %81 = vector.multi_reduction <add>, %80, %cst_20 [1, 2] : vector<1x4x16xf32> to vector<1xf32>
    %82 = vector.shape_cast %81 : vector<1xf32> to vector<1x1x1xf32>
    %83 = vector.extract %82[0, 0, 0] : f32 from vector<1x1x1xf32>
    %84 = arith.subf %25, %26 : vector<2x16xf32>
    %85 = math.absf %84 : vector<2x16xf32>
    %86 = vector.broadcast %27 : vector<1x16xf32> to vector<2x16xf32>
    %87 = arith.mulf %85, %86 : vector<2x16xf32>
    %88 = vector.shape_cast %87 : vector<2x16xf32> to vector<1x2x16xf32>
    %cst_21 = arith.constant dense<0.000000e+00> : vector<1xf32>
    %89 = vector.multi_reduction <add>, %88, %cst_21 [1, 2] : vector<1x2x16xf32> to vector<1xf32>
    %90 = vector.shape_cast %89 : vector<1xf32> to vector<1x1x1xf32>
    %91 = vector.extract %90[0, 0, 0] : f32 from vector<1x1x1xf32>
    %92 = tpu.iota {dimensions = array<i32: 0>} : vector<8x8xi32>
    %93 = tpu.iota {dimensions = array<i32: 1>} : vector<8x8xi32>
    %c0_i32_22 = arith.constant 0 : i32
    %94 = vector.broadcast %c0_i32_22 : i32 to vector<8x8xi32>
    %95 = arith.cmpi eq, %92, %94 : vector<8x8xi32>
    %cst_23 = arith.constant 0.000000e+00 : f32
    %96 = vector.broadcast %cst_23 : f32 to vector<8x8xf32>
    %c0_i32_24 = arith.constant 0 : i32
    %97 = vector.broadcast %c0_i32_24 : i32 to vector<8x8xi32>
    %98 = arith.cmpi eq, %93, %97 : vector<8x8xi32>
    %99 = arith.andi %95, %98 : vector<8x8xi1>
    %cst_25 = arith.constant 0.000000e+00 : f32
    %100 = vector.broadcast %83 : f32 to vector<8x8xf32>
    %101 = vector.broadcast %cst_25 : f32 to vector<8x8xf32>
    %102 = arith.select %99, %100, %101 : vector<8x8xi1>, vector<8x8xf32>
    %103 = arith.addf %96, %102 : vector<8x8xf32>
    %c1_i32_26 = arith.constant 1 : i32
    %104 = vector.broadcast %c1_i32_26 : i32 to vector<8x8xi32>
    %105 = arith.cmpi eq, %93, %104 : vector<8x8xi32>
    %106 = arith.andi %95, %105 : vector<8x8xi1>
    %cst_27 = arith.constant 0.000000e+00 : f32
    %107 = vector.broadcast %91 : f32 to vector<8x8xf32>
    %108 = vector.broadcast %cst_27 : f32 to vector<8x8xf32>
    %109 = arith.select %106, %107, %108 : vector<8x8xi1>, vector<8x8xf32>
    %110 = arith.addf %103, %109 : vector<8x8xf32>
    %c0_28 = arith.constant 0 : index
    %c0_29 = arith.constant 0 : index
    %111 = vector.load %arg4[%c0_28, %c0_29] : memref<8x8xf32, #tpu.memory_space<vmem>>, vector<8x8xf32>
    %112 = arith.addf %111, %110 : vector<8x8xf32>
    %c0_30 = arith.constant 0 : index
    %c0_31 = arith.constant 0 : index
    %113 = vector.load %arg4[%c0_30, %c0_31] : memref<8x8xf32, #tpu.memory_space<vmem>>, vector<8x8xf32>
    tpu.vector_store %arg4[%c0_30, %c0_31], %112 {strides = array<i32>} : memref<8x8xf32, #tpu.memory_space<vmem>>, vector<8x8xf32>,
    return
  }
  func.func @transform_0(%arg0: i32, %arg1: i32) -> (i32, i32) {
    %c1_i32 = arith.constant 1 : i32
    %0 = arith.muli %arg0, %c1_i32 : i32
    %1 = arith.addi %0, %arg1 : i32
    %c0_i32 = arith.constant 0 : i32
    %2 = arith.minsi %1, %c0_i32 : i32
    %c0_i32_0 = arith.constant 0 : i32
    %c0_i32_1 = arith.constant 0 : i32
    return %c0_i32_0, %2 : i32, i32
  }
  func.func @transform_1(%arg0: i32, %arg1: i32) -> (i32, i32) {
    %c1_i32 = arith.constant 1 : i32
    %0 = arith.muli %arg0, %c1_i32 : i32
    %1 = arith.addi %0, %arg1 : i32
    %c0_i32 = arith.constant 0 : i32
    %2 = arith.minsi %1, %c0_i32 : i32
    %c0_i32_0 = arith.constant 0 : i32
    %c0_i32_1 = arith.constant 0 : i32
    return %c0_i32_0, %2 : i32, i32
  }
  func.func @transform_2(%arg0: i32, %arg1: i32) -> (i32, i32) {
    %c0_i32 = arith.constant 0 : i32
    %c0_i32_0 = arith.constant 0 : i32
    return %arg0, %c0_i32 : i32, i32
  }
}

</mosaic_0001>

<llo_original>
// kernel: tpu_custom_call.1
$region0: #{tpu_custom_call.1}
  #allocation0 [shape = 'u32[]', space=smem, size = 0x4, offset = 0x4, fixed_abs, tag = 'smem constant byte address 0x4 - core index']
  #allocation1 [shape = 'u32[144,128]{1,0:T(1,128)}', space=vmem, size = 0x12000, scoped, tag = 'internal scratch']
  %s0 = inlined_call_operand.hbm [shape: f32[4,16], index: 0, kind: input, shape index: {}]
  %s1 = inlined_call_operand.hbm [shape: f32[8,16], index: 1, kind: input, shape index: {}]
  %s2 = inlined_call_operand.vmem [shape: f32[16,8], index: 2, kind: output, shape index: {}]
  %s3 = sld [smem:[#allocation0]]
  $region53: #{tpu_custom_call.1} parent=0
    _
  %s5 = ssub.s32 1, %s3
  %s6 = scalar_select 0, %s5, %s3
  $region1: #{tpu_custom_call.1} parent=0
    #allocation2 [shape = 'u8[4096]{0}', space=vmem, size = 0x1000, scoped, tag = 'input window, operand 0']
    #allocation3 [shape = 's32[2]{0}', space=sflag, size = 0x8, scoped, tag = 'scoped memory for tpu_custom_call.1']
    #allocation4 [shape = 'u8[8192]{0}', space=vmem, size = 0x2000, scoped, tag = 'input window, operand 1']
    #allocation5 [shape = 's32[2]{0}', space=sflag, size = 0x8, scoped, tag = 'scoped memory for tpu_custom_call.1']
    %7 = vsyncpa [#allocation3], 0
    %s8 = scalar_lea.sflag [#allocation3], 1
    %9 = vsyncpa %s8, 0
    %10 = vsyncpa [#allocation5], 0
    %s11 = scalar_lea.sflag [#allocation5], 1
    %12 = vsyncpa %s11, 0
    loop: start=0, step=1, limit=4
    $region2: #{tpu_custom_call.1} parent=1 // loop_pre_header
      _
    $region3: #{tpu_custom_call.1} parent=1 // loop_header
      %s14 = sphi 0, %s18
      %p15 = scmp.ge.s32.totalorder %s14, 4
      %s21 = sphi 0, %s33
      %s22 = sphi 0, %s29
      %s23 = sphi 0, %s21
      %s24 = sphi 0, %s22
      %s25 = sphi 0, %s23
      %s26 = sphi 0, %s24
      %s42 = sphi 0, %s44
      %s45 = sphi 0, %s42
      %s46 = sphi 0, %s45
      %s62 = sphi 0, %s46
      %s74 = sphi 0, %s76
      %s77 = sphi 0, %s74
      %s78 = sphi 0, %s77
      %s94 = sphi 0, %s78
      %s100 = sphi 0, %s102
      %s103 = sphi 0, %s100
      %s104 = sphi 0, %s103
      %s120 = sphi 0, %s104
    $region4: #{tpu_custom_call.1} parent=1 // loop_header_branch
      %17 = sbr.rel (%p15) target = $region8
    $region5: #{tpu_custom_call.1} parent=1 // loop_body
      %s19 = ssub.s32 %s14, 1
      %s20 = ssub.s32 %s14, 2
      %s27 = sadd.s32 1, %s22
      %p28 = scmp.ge.s32.totalorder %s27, 1
      %s29 = scalar_select %p28, 0, %s27
      %s30 = sadd.s32 1, %s21
      %s31 = scalar_select %p28, %s30, %s21
      %p32 = scmp.ge.s32.totalorder %s31, 2
      %s33 = scalar_select %p32, 0, %s31
      %s34 = sadd.s32 %s21, %s22
      %p35 = scmp.lt.s32.totalorder %s34, 0
      %s36 = scalar_select %p35, %s34, 0
      %s37 = sadd.s32 %s33, %s29
      %p38 = scmp.lt.s32.totalorder %s37, 0
      %s39 = scalar_select %p38, %s37, 0
      %s40 = ssub.s32 %s36, %s39
      %p41 = scmp.eq.s32.totalorder %s40, 0
      %s43 = sadd.s32 %s42, 1
      %s44 = scalar_select %p41, %s42, %s43
      %p47 = pneg %p41
      %p48 = scmp.eq.s32.totalorder %s14, 1
      %p49 = por %p47, %p48
      %p50 = scmp.ne.s32.totalorder %s42, %s45
      %p51 = scmp.eq.s32.totalorder %s14, 0
      %p52 = por %p50, %p51
      %p53 = scmp.ne.s32.totalorder %s42, %s45
      %p54 = scmp.eq.s32.totalorder %s19, 1
      %p55 = por %p53, %p54
      %p56 = scmp.ne.s32.totalorder %s45, %s46
      %p57 = scmp.eq.s32.totalorder %s19, 0
      %p58 = por %p56, %p57
      %p59 = scmp.ne.s32.totalorder %s45, %s46
      %p60 = scmp.eq.s32.totalorder %s20, 1
      %p61 = por %p59, %p60
      %p63 = scmp.ne.s32.totalorder %s46, %s62
      %p64 = scmp.eq.s32.totalorder %s20, 0
      %p65 = por %p63, %p64
      %s66 = sadd.s32 %s21, %s22
      %p67 = scmp.lt.s32.totalorder %s66, 0
      %s68 = scalar_select %p67, %s66, 0
      %s69 = sadd.s32 %s33, %s29
      %p70 = scmp.lt.s32.totalorder %s69, 0
      %s71 = scalar_select %p70, %s69, 0
      %s72 = ssub.s32 %s68, %s71
      %p73 = scmp.eq.s32.totalorder %s72, 0
      %s75 = sadd.s32 %s74, 1
      %s76 = scalar_select %p73, %s74, %s75
      %p79 = pneg %p73
      %p80 = scmp.eq.s32.totalorder %s14, 1
      %p81 = por %p79, %p80
      %p82 = scmp.ne.s32.totalorder %s74, %s77
      %p83 = scmp.eq.s32.totalorder %s14, 0
      %p84 = por %p82, %p83
      %p85 = scmp.ne.s32.totalorder %s74, %s77
      %p86 = scmp.eq.s32.totalorder %s19, 1
      %p87 = por %p85, %p86
      %p88 = scmp.ne.s32.totalorder %s77, %s78
      %p89 = scmp.eq.s32.totalorder %s19, 0
      %p90 = por %p88, %p89
      %p91 = scmp.ne.s32.totalorder %s77, %s78
      %p92 = scmp.eq.s32.totalorder %s20, 1
      %p93 = por %p91, %p92
      %p95 = scmp.ne.s32.totalorder %s78, %s94
      %p96 = scmp.eq.s32.totalorder %s20, 0
      %p97 = por %p95, %p96
      %s98 = ssub.s32 %s21, %s33
      %p99 = scmp.eq.s32.totalorder %s98, 0
      %s101 = sadd.s32 %s100, 1
      %s102 = scalar_select %p99, %s100, %s101
      %p105 = pneg %p99
      %p106 = scmp.eq.s32.totalorder %s14, 1
      %p107 = por %p105, %p106
      %p108 = scmp.ne.s32.totalorder %s100, %s103
      %p109 = scmp.eq.s32.totalorder %s14, 0
      %p110 = por %p108, %p109
      %p111 = scmp.ne.s32.totalorder %s100, %s103
      %p112 = scmp.eq.s32.totalorder %s19, 1
      %p113 = por %p111, %p112
      %p114 = scmp.ne.s32.totalorder %s103, %s104
      %p115 = scmp.eq.s32.totalorder %s19, 0
      %p116 = por %p114, %p115
      %p117 = scmp.ne.s32.totalorder %s103, %s104
      %p118 = scmp.eq.s32.totalorder %s20, 1
      %p119 = por %p117, %p118
      %p121 = scmp.ne.s32.totalorder %s104, %s120
      %p122 = scmp.eq.s32.totalorder %s20, 0
      %p123 = por %p121, %p122
      %p124 = scmp.le.s32.totalorder 1, %s14
      %p125 = scmp.lt.s32.totalorder %s14, 3
      %p126 = pnand %p124, %p125
      %p127 = pneg %p126
      // Predicated region
      $region9: #{tpu_custom_call.1} parent=5 // pred_check
        _
      $region10: #{tpu_custom_call.1} parent=5 // pred_check_branch
        %129 = sbr.rel (%p126) target = $region12
      $region11: #{tpu_custom_call.1} parent=5 // pred_region
        %s130 = ssub.s32 %s14, 1
      $region12: #{tpu_custom_call.1} parent=5 // pred_fallthru
        _
      %p131 = scmp.lt.s32.totalorder %s14, 2
      // Predicated region
      $region13: #{tpu_custom_call.1} parent=5 // pred_check
        %p132 = pneg %p131
      $region14: #{tpu_custom_call.1} parent=5 // pred_check_branch
        %134 = sbr.rel (%p132) target = $region16
      $region15: #{tpu_custom_call.1} parent=5 // pred_region
        // Predicated region
        $region17: #{tpu_custom_call.1} parent=15 // pred_check
          %p135 = pneg %p52
        $region18: #{tpu_custom_call.1} parent=15 // pred_check_branch
          %137 = sbr.rel (%p135) target = $region20
        $region19: #{tpu_custom_call.1} parent=15 // pred_region
          %s138 = sand.u32 %s42, 1
          %s139 = scalar_lea.sflag [#allocation3], %s138
          %s140 = sand.u32 %s42, 1
          %s141 = smul.addr %s140, 4
          %s142 = scalar_lea.vmem [#allocation2], %s141
          %s143 = sadd.s32 %s21, %s22
          %p144 = scmp.lt.s32.totalorder %s143, 0
          %s145 = scalar_select %p144, %s143, 0
          %s147 = ssub.s32 64, 64
          %148 = vsyncadd %s139, %s147
          %s149 = smul.addr %s145, 64
          %s150 = scalar_lea.hbm %s0, %s149
          %s152 = sshll.u32 %s142, 4
          %s153 = int_to_ptr.vmem [resolvable:$true] %s152
          %155 = dma.hbm_to_vmem [thread:$0]  %s150, 64, %s153, %s139
        $region20: #{tpu_custom_call.1} parent=15 // pred_fallthru
          _
        // Predicated region
        $region21: #{tpu_custom_call.1} parent=15 // pred_check
          %p156 = pneg %p84
        $region22: #{tpu_custom_call.1} parent=15 // pred_check_branch
          %158 = sbr.rel (%p156) target = $region24
        $region23: #{tpu_custom_call.1} parent=15 // pred_region
          %s159 = sand.u32 %s74, 1
          %s160 = scalar_lea.sflag [#allocation5], %s159
          %s161 = sand.u32 %s74, 1
          %s162 = smul.addr %s161, 8
          %s163 = scalar_lea.vmem [#allocation4], %s162
          %s164 = sadd.s32 %s21, %s22
          %p165 = scmp.lt.s32.totalorder %s164, 0
          %s166 = scalar_select %p165, %s164, 0
          %s168 = ssub.s32 128, 128
          %169 = vsyncadd %s160, %s168
          %s170 = smul.addr %s166, 128
          %s171 = scalar_lea.hbm %s1, %s170
          %s173 = sshll.u32 %s163, 4
          %s174 = int_to_ptr.vmem [resolvable:$true] %s173
          %176 = dma.hbm_to_vmem [thread:$0]  %s171, 128, %s174, %s160
        $region24: #{tpu_custom_call.1} parent=15 // pred_fallthru
          _
      $region16: #{tpu_custom_call.1} parent=5 // pred_fallthru
        _
      %p177 = scmp.le.s32.totalorder 1, %s14
      %p178 = scmp.lt.s32.totalorder %s14, 3
      %p179 = pnand %p177, %p178
      %p180 = pneg %p179
      // Predicated region
      $region25: #{tpu_custom_call.1} parent=5 // pred_check
        _
      $region26: #{tpu_custom_call.1} parent=5 // pred_check_branch
        %182 = sbr.rel (%p179) target = $region28
      $region27: #{tpu_custom_call.1} parent=5 // pred_region
        %s183 = ssub.s32 %s14, 1
        %s184 = sand.u32 %s45, 1
        %s185 = scalar_lea.sflag [#allocation3], %s184
        %s186 = sand.u32 %s45, 1
        %s187 = smul.addr %s186, 4
        %s188 = scalar_lea.vmem [#allocation2], %s187
        // Predicated region
        $region29: #{tpu_custom_call.1} parent=27 // pred_check
          %p189 = pneg %p58
        $region30: #{tpu_custom_call.1} parent=27 // pred_check_branch
          %191 = sbr.rel (%p189) target = $region32
        $region31: #{tpu_custom_call.1} parent=27 // pred_region
          %192 = dma.done %s185, 64
        $region32: #{tpu_custom_call.1} parent=27 // pred_fallthru
          _
        %s193 = sand.u32 %s77, 1
        %s194 = scalar_lea.sflag [#allocation5], %s193
        %s195 = sand.u32 %s77, 1
        %s196 = smul.addr %s195, 8
        %s197 = scalar_lea.vmem [#allocation4], %s196
        // Predicated region
        $region33: #{tpu_custom_call.1} parent=27 // pred_check
          %p198 = pneg %p90
        $region34: #{tpu_custom_call.1} parent=27 // pred_check_branch
          %200 = sbr.rel (%p198) target = $region36
        $region35: #{tpu_custom_call.1} parent=27 // pred_region
          %201 = dma.done %s194, 128
        $region36: #{tpu_custom_call.1} parent=27 // pred_fallthru
          _
        %s202 = sand.u32 %s45, 1
        %s203 = scalar_lea.sflag [#allocation3], %s202
        %s204 = sand.u32 %s45, 1
        %s205 = smul.addr %s204, 4
        %s206 = scalar_lea.vmem [#allocation2], %s205
        %p207 = pneg %p58
        %p208 = pneg %p55
        %s209 = sand.u32 %s77, 1
        %s210 = scalar_lea.sflag [#allocation5], %s209
        %s211 = sand.u32 %s77, 1
        %s212 = smul.addr %s211, 8
        %s213 = scalar_lea.vmem [#allocation4], %s212
        %p214 = pneg %p90
        %p215 = pneg %p87
        %p216 = pneg %p116
        %p217 = pneg %p113
        %p218 = scmp.lt.s32.totalorder %s23, 1
        %s219 = scalar_select %p218, %s23, 1
        %s220 = smul.addr %s219, 8
        %s221 = scalar_lea.vmem %s2, %s220
        %s222 = sadd.s32 %s23, %s24
        %p223 = scmp.lt.s32.totalorder %s222, 0
        %s224 = scalar_select %p223, %s222, 0
        %s225 = sadd.s32 %s23, %s24
        %p226 = scmp.lt.s32.totalorder %s225, 0
        %s227 = scalar_select %p226, %s225, 0
        %p228 = scmp.lt.s32.totalorder %s23, 1
        %s229 = scalar_select %p228, %s23, 1
        %s230 = smul.addr %s229, 8
        %s231 = scalar_lea.vmem %s2, %s230
        %p232 = scmp.eq.s32.totalorder %s24, 0
        // Predicated region
        $region37: #{tpu_custom_call.1} parent=27 // pred_check
          %p233 = pneg %p232
        $region38: #{tpu_custom_call.1} parent=27 // pred_check_branch
          %235 = sbr.rel (%p233) target = $region40
        $region39: #{tpu_custom_call.1} parent=27 // pred_region
          %vm236 = vcmask 64512
          %237 = vst.msk [vmem:[%s231] sm:$0xff] %vm236, 0.0
        $region40: #{tpu_custom_call.1} parent=27 // pred_fallthru
          _
        %s238 = sadd.s32 %s23, %s24
        %s239 = smul.u32 %s238, 16
        %v240 = vld [vmem:[%s188] sm:$0xf]
        %v241 = vld [vmem:[%s197] sm:$0xff]
        %v242 = vlaneseq
        %v243 = vand.u32 %v242, 127
        %v244 = vstv %s239
        %v245 = vadd.s32 %v244, %v243
        %vm246 = vcmp.lt.s32.totalorder %v245, 16
        %v247 = vsel %vm246, 1, 0
        %v248 = vcvt.s32.f32 %v247
        %vm249 = vcmp.eq.s32.totalorder %v247, 1
        %v250 = vsel %vm249, %v241, 0.0
        %v251 = vsel %vm249, %v240, 0.0
        %v252 = vcvt.f32.s32.to.zero.pseudo %v250
        %v253 = vlaneseq
        %v254 = vshrl.u32 %v253, 7
        %v255 = vlaneseq
        %v256 = vshrl.u32 %v255, 7
        %v257 = vsub.s32 0, %v256
        %v258 = vrot.slane %v252, %v257
        %vm259 = vcmp.eq.s32.totalorder %v254, %v258
        %vm260 = vmand %vm259, %vm249
        %v261 = vsel %vm260, 1.0, 0.0
        %v262 = vand.u32 2147483647, %v251
        %v263 = vsub.f32 0.0, %v262
        %v264 = vmul.f32 %v263, 1.442695
        %v265 = vpow.pop %v264
        %v266 = vadd.f32 %v265, 1.0
        %v267 = vrcp.pop %v266
        %v268 = vmul.f32 %v266, %v267
        %v269 = vsub.f32 2.0, %v268
        %v270 = vmul.f32 %v267, %v269
        %vm271 = vcmp.ge.f32.partialorder %v251, 0.0
        %v272 = vmul.f32 %v265, %v270
        %v273 = vsel %vm271, %v270, %v272
        %v274 = vmax.f32 %v251, 0.0
        %v275 = vlog2.pop %v266
        %v276 = vmul.f32 %v275, 0.6931472
        %v277 = vadd.f32 %v274, %v276
        %v278 = vmul.f32 %v251, %v261
        %v279 = vsub.f32 %v277, %v278
        %v280 = vmul.f32 %v273, %v261
        %v281 = vsub.f32 1.0, %v273
        %v282 = vsub.f32 1.0, %v261
        %v283 = vmul.f32 %v281, %v282
        %v284 = vadd.f32 %v280, %v283
        %v285 = vsub.f32 1.0, %v284
        %v286 = vmul.f32 %v285, %v285
        %v287 = vmul.f32 %v279, %v286
        %v288 = vmul.f32 %v261, 0.25
        %v289 = vmul.f32 %v282, 0.75
        %v290 = vadd.f32 %v288, %v289
        %v291 = vmul.f32 %v290, %v287
        %v292 = vmul.f32 %v291, %v248
        %vm293 = vcmask 125952
        %v294 = vsel %vm293, %v292, 0.0
        %295 = vadd.xlane.f32.xlu0 %v294
        %v296 = vpop.xlane.xlu0 %295
        %v297 = vrot.slane %v296, 4
        %v298 = vadd.f32 %v296, %v297
        %v299 = vrot.slane %v298, 2
        %v300 = vadd.f32 %v298, %v299
        %v301 = vrot.slane %v300, 1
        %v302 = vadd.f32 %v300, %v301
        %s303 = vtos %v302
        %v305 = vrot.slane %v250, 2
        %v307 = vsub.f32 %v250, %v305
        %v308 = vand.u32 2147483647, %v307
        %v309 = vlaneseq
        %v310 = vshrl.u32 %v309, 7
        %v311 = vsub.s32 5, %v310
        %v312 = vrot.slane %v250, %v311
        %v313 = vmul.f32 %v308, %v312
        %v315 = vrot.slane %v313, 1
        %vm317 = vcmask 123904
        %v318 = vsel %vm317, %v315, 0.0
        %319 = vadd.xlane.f32.xlu0 %v318
        %v320 = vpop.xlane.xlu0 %319
        %v321 = vrot.slane %v320, 4
        %v322 = vadd.f32 %v320, %v321
        %v323 = vrot.slane %v322, 2
        %v324 = vadd.f32 %v322, %v323
        %v325 = vrot.slane %v324, 1
        %v326 = vadd.f32 %v324, %v325
        %s327 = vtos %v326
        %vm328 = vcmp.eq.s32.totalorder %v254, 0
        %vm329 = vcmp.eq.s32.totalorder %v243, 0
        %vm330 = vmand %vm328, %vm329
        %v331 = vstv %s303
        %v332 = vsel %vm330, %v331, 0.0
        %v333 = vadd.f32 %v332, 0.0
        %vm334 = vcmp.eq.s32.totalorder %v243, 1
        %vm335 = vmand %vm328, %vm334
        %v336 = vstv %s327
        %v337 = vsel %vm335, %v336, 0.0
        %v338 = vadd.f32 %v333, %v337
        %v339 = vld [vmem:[%s231] sm:$0xff]
        %v340 = vadd.f32 %v339, %v338
        %vm341 = vcmask 64512
        %342 = vst.msk [vmem:[%s231] sm:$0xff] %vm341, %v340
        %p343 = scmp.lt.s32.totalorder %s23, 1
        %s344 = scalar_select %p343, %s23, 1
        %s345 = smul.addr %s344, 8
        %s346 = scalar_lea.vmem %s2, %s345
        // Predicated region
        $region41: #{tpu_custom_call.1} parent=27 // pred_check
          %p347 = pneg %p113
        $region42: #{tpu_custom_call.1} parent=27 // pred_check_branch
          %349 = sbr.rel (%p347) target = $region44
        $region43: #{tpu_custom_call.1} parent=27 // pred_region
          _
        $region44: #{tpu_custom_call.1} parent=27 // pred_fallthru
          _
      $region28: #{tpu_custom_call.1} parent=5 // pred_fallthru
        _
      %p350 = scmp.le.s32.totalorder 2, %s14
      // Predicated region
      $region45: #{tpu_custom_call.1} parent=5 // pred_check
        %p351 = pneg %p350
      $region46: #{tpu_custom_call.1} parent=5 // pred_check_branch
        %353 = sbr.rel (%p351) target = $region48
      $region47: #{tpu_custom_call.1} parent=5 // pred_region
        %s354 = ssub.s32 %s14, 2
        // Predicated region
        $region49: #{tpu_custom_call.1} parent=47 // pred_check
          %p355 = pneg %p119
        $region50: #{tpu_custom_call.1} parent=47 // pred_check_branch
          %357 = sbr.rel (%p355) target = $region52
        $region51: #{tpu_custom_call.1} parent=47 // pred_region
          %p358 = scmp.lt.s32.totalorder %s25, 1
          %s359 = scalar_select %p358, %s25, 1
          %s360 = smul.addr %s359, 8
          %s361 = scalar_lea.vmem %s2, %s360
        $region52: #{tpu_custom_call.1} parent=47 // pred_fallthru
          _
      $region48: #{tpu_custom_call.1} parent=5 // pred_fallthru
        _
    $region6: #{tpu_custom_call.1} parent=1 // loop_footer
      %s18 = sadd.s32 1, %s14
    $region7: #{tpu_custom_call.1} parent=1 // loop_footer_branch
      %13 = sbr.rel target = $region3
    $region8: #{tpu_custom_call.1} parent=1 // loop_exit
      _
    %362 = vsyncpa [#allocation3], 1
    %s363 = scalar_lea.sflag [#allocation3], 1
    %364 = vsyncpa %s363, 1
    %365 = vsyncpa [#allocation5], 1
    %s366 = scalar_lea.sflag [#allocation5], 1
    %367 = vsyncpa %s366, 1

</llo_original>
